<compile_context>
chip_gen: v5e
topology: v5e:2x2
jax: 0.10.0
libtpu: 0.0.40
codegen_flags: <defaults>
</compile_context>

<pallas_src>
import math

import jax
import jax.numpy as jnp
from jax.experimental import pallas as pl
from jax.experimental.pallas import tpu as pltpu


# --------------------------------------------------------------------------
# PE table (same math as the PyTorch __init__).
# --------------------------------------------------------------------------
def make_pe(max_len: int, d_model: int, dtype=jnp.float32) -> jnp.ndarray:
    position = jnp.arange(max_len, dtype=jnp.float32)[:, None]            # (max_len, 1)
    div_term = jnp.exp(
        jnp.arange(0, d_model, 2, dtype=jnp.float32) * (-math.log(10000.0) / d_model)
    )                                                                     # (d_model/2,)
    angles = position * div_term                                          # (max_len, d_model/2)
    pe = jnp.zeros((max_len, d_model), jnp.float32)
    pe = pe.at[:, 0::2].set(jnp.sin(angles))
    pe = pe.at[:, 1::2].set(jnp.cos(angles))
    return pe.astype(dtype)                                               # (max_len, d_model)


# --------------------------------------------------------------------------
# Kernel: o = x + pe, pe replicated across the packed batch chunks in lane
# direction WITHOUT materializing a tiled temporary.
# --------------------------------------------------------------------------
def _posenc_kernel(x_ref, pe_ref, o_ref):
    # x_ref/o_ref: (tl, bd_tile); pe_ref: (tl, W) with bd_tile % W == 0.
    W = pe_ref.shape[1]
    chunks = x_ref.shape[1] // W
    pe = pe_ref[...]                       # loaded once, reused for every chunk

    if chunks == 1:
        o_ref[...] = x_ref[...] + pe
    elif chunks <= 32:
        # Static unroll: per-batch aligned lane-block adds (W % 128 == 0 here).
        for k in range(chunks):
            sl = slice(k * W, (k + 1) * W)
            o_ref[:, sl] = x_ref[:, sl] + pe
    else:
        @pl.loop(0, chunks)
        def _(k):
            off = pl.multiple_of(k * W, 128)
            o_ref[:, pl.ds(off, W)] = x_ref[:, pl.ds(off, W)] + pe


# --------------------------------------------------------------------------
# Tiling heuristics.
# --------------------------------------------------------------------------
def _vmem_capacity_bytes() -> int:
    try:
        return int(pltpu.get_tpu_info().vmem_capacity_bytes)
    except Exception:
        return 64 << 20            # conservative (v7x-sized) if query fails


def _pe_replication(B: int, D: int) -> int:
    """Smallest r dividing B with (r*D) % 128 == 0 (lane-aligned chunk width);
    falls back to full replication r=B (single chunk == full lane width)."""
    for r in range(1, B):
        if B % r == 0 and (r * D) % 128 == 0:
            return r
    return B


def _choose_tiles(L: int, BD: int, W: int, itemsize: int):
    vmem = _vmem_capacity_bytes()
    small_vmem = vmem < (100 << 20)            # v7x-like: 64 MiB VMEM, 2 TCs
    budget = (12 << 20) if small_vmem else (28 << 20)
    vmem_limit = min(int(vmem * 3 // 4), 96 << 20)
    min_seq_steps = 2 if small_vmem else 1     # engage both TensorCores on v7x

    sub = max(8, 32 // itemsize)               # sublane multiple per dtype
    chunks = BD // W

    # Lane (BD) tile: largest divisor c of `chunks` whose minimum-height block
    # (double-buffered x + out, double-buffered pe) still fits the budget.
    def block_bytes(tl, c):
        return (4 * tl * c * W + 2 * tl * W) * itemsize

    c = chunks
    while c > 1 and block_bytes(sub, c) > budget:
        c -= 1
        while c > 1 and chunks % c != 0:
            c -= 1
    bd_tile = c * W

    # Seq tile: largest multiple of `sub` fitting the budget (few big steps).
    row_bytes = (4 * bd_tile + 2 * W) * itemsize
    tl = max(sub, (budget // max(row_bytes, 1)) // sub * sub)
    tl = min(tl, L)

    # v7x: don't collapse to a single step — split seq so both cores stream.
    if min_seq_steps > 1 and tl >= L and L > sub:
        half = (L + 1) // 2
        tl = min(L, ((half + sub - 1) // sub) * sub)

    return tl, bd_tile, vmem_limit


# --------------------------------------------------------------------------
# Wrapper.
# --------------------------------------------------------------------------
def positional_encoding(x: jnp.ndarray, pe: jnp.ndarray, *,
                        force_pallas: bool = False) -> jnp.ndarray:
    """output = x + pe[:L]  with x: (L, B, D), pe: (max_len, D).

    Note: pe is cast to x.dtype before the add (benign double-round for bf16
    vs PyTorch's f32 accumulate). Callers that run this every step should
    precompute pe in the model dtype once and pass a contiguous x so the
    (L, B*D) reshape stays a free view.
    """
    L, B, D = x.shape
    itemsize = jnp.dtype(x.dtype).itemsize
    pe_sl = pe[:L].astype(x.dtype)                                  # (L, D)

    rep = _pe_replication(B, D)

    # Small / awkward-shape fast path: below ~2 MiB kernel-launch + per-step
    # overhead beats the fused XLA broadcast-add; likewise for unaligned D
    # that would require full lane replication of pe.
    total_bytes = L * B * D * itemsize
    if not force_pallas and (total_bytes < (2 << 20) or (rep == B and B > 1)):
        return x + pe_sl[:, None, :]

    BD = B * D
    W = rep * D
    x_flat = x.reshape(L, BD)                                       # free view
    pe_w = pe_sl if rep == 1 else jnp.tile(pe_sl, (1, rep))         # (L, W)

    tl, bd_tile, vmem_limit = _choose_tiles(L, BD, W, itemsize)
    grid = (pl.cdiv(L, tl), BD // bd_tile)

    out_flat = pl.pallas_call(
        _posenc_kernel,
        out_shape=jax.ShapeDtypeStruct((L, BD), x.dtype),
        grid=grid,
        in_specs=[
            pl.BlockSpec((tl, bd_tile), lambda i, j: (i, j)),       # x
            pl.BlockSpec((tl, W), lambda i, j: (i, 0)),             # pe (reused)
        ],
        out_specs=pl.BlockSpec((tl, bd_tile), lambda i, j: (i, j)),
        compiler_params=pltpu.CompilerParams(
            dimension_semantics=("parallel", "parallel"),
            vmem_limit_bytes=vmem_limit,
        ),
        cost_estimate=pl.CostEstimate(
            flops=L * BD,
            transcendentals=0,
            bytes_accessed=(2 * L * BD + L * W) * itemsize,
        ),
    )(x_flat, pe_w)

    return out_flat.reshape(L, B, D)


# --------------------------------------------------------------------------
# Self-test.
# --------------------------------------------------------------------------
if __name__ == "__main__":
    # Small shapes consistent with the module: seq=8, batch=2, d_model=32.
    L, B, D = 8, 2, 32
    MAX_LEN = 64

    key = jax.random.PRNGKey(0)
    x = jax.random.normal(key, (L, B, D), dtype=jnp.float32)
    pe = make_pe(MAX_LEN, D)

    out = positional_encoding(x, pe, force_pallas=True)     # force the Pallas path
    out = jax.block_until_ready(out)

    ref = x + pe[:L][:, None, :]
    assert out.shape == (L, B, D)
    assert out.dtype == x.dtype
    assert jnp.allclose(out, ref, atol=1e-6, rtol=1e-6)

    # Second case: 128-aligned D -> per-batch unrolled adds, multi-chunk path.
    L2, B2, D2 = 512, 4, 128
    x2 = jax.random.normal(jax.random.PRNGKey(1), (L2, B2, D2), dtype=jnp.float32)
    pe2 = make_pe(1024, D2)
    out2 = jax.block_until_ready(positional_encoding(x2, pe2, force_pallas=True))
    ref2 = x2 + pe2[:L2][:, None, :]
    assert jnp.allclose(out2, ref2, atol=1e-6, rtol=1e-6)

    # Default (non-forced) path sanity check.
    out3 = jax.block_until_ready(positional_encoding(x, pe))
    assert jnp.allclose(out3, ref, atol=1e-6, rtol=1e-6)

    print("KERNEL_OK")
</pallas_src>

<mosaic_0001>
module attributes {stable_mosaic.version = 11 : i64} {
  func.func @_posenc_kernel(%arg0: i32, %arg1: i32, %arg2: memref<8x64xf32, #tpu.memory_space<vmem>>, %arg3: memref<8x64xf32, #tpu.memory_space<vmem>>, %arg4: memref<8x64xf32, #tpu.memory_space<vmem>>) attributes {dimension_semantics = [#tpu.dimension_semantics<parallel>, #tpu.dimension_semantics<parallel>], iteration_bounds = array<i64: 1, 1>, scalar_prefetch = 0 : i64, scratch_operands = 0 : i64, tpu.core_type = #tpu.core_type<tc>, window_params = [{transform_indices = @transform_0, window_bounds = array<i64: 8, 64>}, {transform_indices = @transform_1, window_bounds = array<i64: 8, 64>}, {transform_indices = @transform_2, window_bounds = array<i64: 8, 64>}]} {
    %c0 = arith.constant 0 : index
    %c0_0 = arith.constant 0 : index
    %0 = vector.load %arg3[%c0, %c0_0] : memref<8x64xf32, #tpu.memory_space<vmem>>, vector<8x64xf32>
    %c0_1 = arith.constant 0 : index
    %c0_2 = arith.constant 0 : index
    %1 = vector.load %arg2[%c0_1, %c0_2] : memref<8x64xf32, #tpu.memory_space<vmem>>, vector<8x64xf32>
    %2 = arith.addf %1, %0 : vector<8x64xf32>
    %c0_3 = arith.constant 0 : index
    %c0_4 = arith.constant 0 : index
    %3 = vector.load %arg4[%c0_3, %c0_4] : memref<8x64xf32, #tpu.memory_space<vmem>>, vector<8x64xf32>
    tpu.vector_store %arg4[%c0_3, %c0_4], %2 {strides = array<i32>} : memref<8x64xf32, #tpu.memory_space<vmem>>, vector<8x64xf32>,
    return
  }
  func.func @transform_0(%arg0: i32, %arg1: i32) -> (i32, i32) {
    %c0_i32 = arith.constant 0 : i32
    return %arg0, %arg1 : i32, i32
  }
  func.func @transform_1(%arg0: i32, %arg1: i32) -> (i32, i32) {
    %c0_i32 = arith.constant 0 : i32
    %c0_i32_0 = arith.constant 0 : i32
    return %arg0, %c0_i32 : i32, i32
  }
  func.func @transform_2(%arg0: i32, %arg1: i32) -> (i32, i32) {
    %c0_i32 = arith.constant 0 : i32
    return %arg0, %arg1 : i32, i32
  }
}

</mosaic_0001>

<llo_original>
// kernel: tpu_custom_call.1
$region0: #{tpu_custom_call.1}
  #allocation0 [shape = 'u32[]', space=smem, size = 0x4, offset = 0x4, fixed_abs, tag = 'smem constant byte address 0x4 - core index']
  #allocation1 [shape = 'u32[72,128]{1,0:T(1,128)}', space=vmem, size = 0x9000, scoped, tag = 'internal scratch']
  %s0 = inlined_call_operand.hbm [shape: f32[8,64], index: 0, kind: input, shape index: {}]
  %s1 = inlined_call_operand.hbm [shape: f32[8,64], index: 1, kind: input, shape index: {}]
  %s2 = inlined_call_operand.hbm [shape: f32[8,64], index: 2, kind: output, shape index: {}]
  %s3 = sld [smem:[#allocation0]]
  $region26: #{tpu_custom_call.1} parent=0
    _
  %s5 = ssub.s32 1, %s3
  %s6 = scalar_select 0, %s5, %s3
  $region1: #{tpu_custom_call.1} parent=0
    #allocation2 [shape = 'u8[4096]{0}', space=vmem, size = 0x1000, scoped, tag = 'input window, operand 0, single buffered']
    #allocation3 [shape = 's32[1]{0}', space=sflag, size = 0x4, scoped, tag = 'scoped memory for tpu_custom_call.1']
    #allocation4 [shape = 's32[1]{0}', space=sflag, size = 0x4, scoped, tag = 'scoped memory for tpu_custom_call.1']
    #allocation5 [shape = 'u8[4096]{0}', space=vmem, size = 0x1000, scoped, tag = 'input window, operand 1, single buffered']
    #allocation6 [shape = 's32[1]{0}', space=sflag, size = 0x4, scoped, tag = 'scoped memory for tpu_custom_call.1']
    #allocation7 [shape = 'u8[4096]{0}', space=vmem, size = 0x1000, scoped, tag = 'output window, operand 0, single buffered']
    %7 = vsyncpa [#allocation3], 0
    %8 = vsyncpa [#allocation6], 0
    %9 = vsyncpa [#allocation4], 0
    // Predicated region
    $region2: #{tpu_custom_call.1} parent=1 // pred_check
      _
    $region3: #{tpu_custom_call.1} parent=1 // pred_check_branch
      %11 = sbr.rel (0) target = $region5
    $region4: #{tpu_custom_call.1} parent=1 // pred_region
      %13 = vsyncadd [#allocation3], 0
      %s15 = sshll.u32 %s0, 4
      %s16 = int_to_ptr.hbm [resolvable:$true] %s15
      %s17 = sshll.u32 [#allocation2], 4
      %s18 = int_to_ptr.vmem [resolvable:$true] %s17
      %20 = dma.hbm_to_vmem [thread:$0]  %s16, 128, %s18, [#allocation3]
    $region5: #{tpu_custom_call.1} parent=1 // pred_fallthru
      _
    // Predicated region
    $region6: #{tpu_custom_call.1} parent=1 // pred_check
      _
    $region7: #{tpu_custom_call.1} parent=1 // pred_check_branch
      %22 = sbr.rel (0) target = $region9
    $region8: #{tpu_custom_call.1} parent=1 // pred_region
      %24 = vsyncadd [#allocation6], 0
      %s26 = sshll.u32 %s1, 4
      %s27 = int_to_ptr.hbm [resolvable:$true] %s26
      %s28 = sshll.u32 [#allocation5], 4
      %s29 = int_to_ptr.vmem [resolvable:$true] %s28
      %31 = dma.hbm_to_vmem [thread:$0]  %s27, 128, %s29, [#allocation6]
    $region9: #{tpu_custom_call.1} parent=1 // pred_fallthru
      _
    // Predicated region
    $region10: #{tpu_custom_call.1} parent=1 // pred_check
      _
    $region11: #{tpu_custom_call.1} parent=1 // pred_check_branch
      %33 = sbr.rel (0) target = $region13
    $region12: #{tpu_custom_call.1} parent=1 // pred_region
      %35 = dma.done [#allocation3], 128
    $region13: #{tpu_custom_call.1} parent=1 // pred_fallthru
      _
    // Predicated region
    $region14: #{tpu_custom_call.1} parent=1 // pred_check
      _
    $region15: #{tpu_custom_call.1} parent=1 // pred_check_branch
      %37 = sbr.rel (0) target = $region17
    $region16: #{tpu_custom_call.1} parent=1 // pred_region
      %39 = dma.done [#allocation6], 128
    $region17: #{tpu_custom_call.1} parent=1 // pred_fallthru
      _
    %v40 = vld [vmem:[#allocation5] sm:$0xff]
    %v41 = vld [vmem:[#allocation2] sm:$0xff]
    %v42 = vadd.f32 %v41, %v40
    %vm43 = vcmask 523264
    %44 = vst.msk [vmem:[#allocation7] sm:$0xff] %vm43, %v42
    // Predicated region
    $region18: #{tpu_custom_call.1} parent=1 // pred_check
      _
    $region19: #{tpu_custom_call.1} parent=1 // pred_check_branch
      %46 = sbr.rel (0) target = $region21
    $region20: #{tpu_custom_call.1} parent=1 // pred_region
      %48 = vsyncadd [#allocation4], 0
      %s50 = sshll.u32 [#allocation7], 4
      %s51 = int_to_ptr.vmem [resolvable:$true] %s50
      %s52 = sshll.u32 %s2, 4
      %s53 = int_to_ptr.hbm [resolvable:$true] %s52
      %55 = dma.vmem_to_hbm [thread:$0]  %s51, 128, %s53, [#allocation4]
    $region21: #{tpu_custom_call.1} parent=1 // pred_fallthru
      _
    // Predicated region
    $region22: #{tpu_custom_call.1} parent=1 // pred_check
      _
    $region23: #{tpu_custom_call.1} parent=1 // pred_check_branch
      %57 = sbr.rel (0) target = $region25
    $region24: #{tpu_custom_call.1} parent=1 // pred_region
      %59 = dma.done [#allocation4], 128
    $region25: #{tpu_custom_call.1} parent=1 // pred_fallthru
      _
    %60 = vsyncpa [#allocation3], 1
    %61 = vsyncpa [#allocation6], 1
    %62 = vsyncpa [#allocation4], 1

</llo_original>
